<compile_context>
chip_gen: v7x
topology: tpu7x:2x2x1
jax: 0.10.0
libtpu: 0.0.40
codegen_flags: <defaults>
</compile_context>

<pallas_src>
import numpy as np
import jax
import jax.numpy as jnp
from jax.experimental import pallas as pl
from jax.experimental.pallas import tpu as pltpu

_LANE = 128
_SUBLANE = 8


def _latent_kernel(mu_ref, qvar_ref, eps_ref, x_ref, var_ref):
    var = jnp.exp(qvar_ref[...])
    x_ref[...] = mu_ref[...] + jnp.sqrt(var) * eps_ref[...]
    var_ref[...] = var


def latent_trajectory_forward(q_mu_params, q_var_params, *, key=None, eps=None,
                              block_rows=512):
    """Pallas TPU implementation of LatentTrajectoryIndependent.forward.

    Returns (x, mu, var) exactly like the torch module.  `eps` may be supplied
    explicitly (for testing); otherwise it is drawn from `key`.
    """
    # TODO(synk): torch.normal's RNG stream cannot be reproduced bit-for-bit;
    # eps is drawn with jax.random in the wrapper (or passed in) rather than
    # the on-chip pltpu PRNG so the kernel output stays exactly verifiable.
    shape = q_mu_params.shape
    f32 = jnp.float32
    if eps is None:
        if key is None:
            raise ValueError("either `key` or `eps` must be provided")
        eps = jax.random.normal(key, shape, dtype=f32)

    n = int(np.prod(shape))
    rows = -(-n // _LANE)                                   # ceil(n / 128)
    tile_rows = min(block_rows, -(-rows // _SUBLANE) * _SUBLANE)
    rows_p = -(-rows // tile_rows) * tile_rows              # multiple of tile
    pad = rows_p * _LANE - n

    def _prep(a):
        a = jnp.ravel(a).astype(f32)
        if pad:
            a = jnp.pad(a, (0, pad))        # zero pad: exp(0)=1, sqrt(1)=1, ok
        return a.reshape(rows_p, _LANE)

    mu2 = _prep(q_mu_params)
    qv2 = _prep(q_var_params)
    eps2 = _prep(eps)

    spec = pl.BlockSpec((tile_rows, _LANE), lambda i: (i, 0))

    x2, var2 = pl.pallas_call(
        _latent_kernel,
        grid_spec=pltpu.PrefetchScalarGridSpec(
            num_scalar_prefetch=0,
            grid=(rows_p // tile_rows,),
            in_specs=[spec, spec, spec],
            out_specs=[spec, spec],
        ),
        out_shape=[jax.ShapeDtypeStruct((rows_p, _LANE), f32),
                   jax.ShapeDtypeStruct((rows_p, _LANE), f32)],
        compiler_params=pltpu.CompilerParams(
            dimension_semantics=("parallel",)),
    )(mu2, qv2, eps2)

    x = x2.reshape(-1)[:n].reshape(shape)
    var = var2.reshape(-1)[:n].reshape(shape)
    mu = q_mu_params                        # passthrough, no copy
    return x, mu, var


if __name__ == "__main__":
    key = jax.random.PRNGKey(0)
    k_mu, k_var, k_eps = jax.random.split(key, 3)

    # shape = (num_time - 1, num_subj, num_taxa), as set by init_from_data
    shape = (7, 3, 16)
    q_mu = jax.random.normal(k_mu, shape, jnp.float32)
    q_var_params = jax.random.normal(k_var, shape, jnp.float32)

    x, mu, var = latent_trajectory_forward(q_mu, q_var_params, key=k_eps)
    jax.block_until_ready((x, mu, var))

    # pure-JAX reference using the identical eps stream
    eps = jax.random.normal(k_eps, shape, jnp.float32)
    var_ref = jnp.exp(q_var_params)
    x_ref = q_mu + jnp.sqrt(var_ref) * eps

    np.testing.assert_allclose(np.asarray(var), np.asarray(var_ref),
                               rtol=1e-6, atol=1e-6)
    np.testing.assert_allclose(np.asarray(x), np.asarray(x_ref),
                               rtol=1e-6, atol=1e-6)
    np.testing.assert_allclose(np.asarray(mu), np.asarray(q_mu))

    print("KERNEL_OK")
</pallas_src>

<mosaic_0001>
module attributes {stable_mosaic.version = 11 : i64} {
  func.func @_latent_kernel(%arg0: i32, %arg1: memref<8x128xf32, #tpu.memory_space<vmem>>, %arg2: memref<8x128xf32, #tpu.memory_space<vmem>>, %arg3: memref<8x128xf32, #tpu.memory_space<vmem>>, %arg4: memref<8x128xf32, #tpu.memory_space<vmem>>, %arg5: memref<8x128xf32, #tpu.memory_space<vmem>>) attributes {dimension_semantics = [#tpu.dimension_semantics<parallel>], iteration_bounds = array<i64: 1>, scalar_prefetch = 0 : i64, scratch_operands = 0 : i64, tpu.core_type = #tpu.core_type<tc>, window_params = [{transform_indices = @transform_0, window_bounds = array<i64: 8, 128>}, {transform_indices = @transform_1, window_bounds = array<i64: 8, 128>}, {transform_indices = @transform_2, window_bounds = array<i64: 8, 128>}, {transform_indices = @transform_3, window_bounds = array<i64: 8, 128>}, {transform_indices = @transform_4, window_bounds = array<i64: 8, 128>}]} {
    %c0 = arith.constant 0 : index
    %c0_0 = arith.constant 0 : index
    %0 = vector.load %arg2[%c0, %c0_0] : memref<8x128xf32, #tpu.memory_space<vmem>>, vector<8x128xf32>
    %1 = math.exp %0 : vector<8x128xf32>
    %c0_1 = arith.constant 0 : index
    %c0_2 = arith.constant 0 : index
    %2 = vector.load %arg1[%c0_1, %c0_2] : memref<8x128xf32, #tpu.memory_space<vmem>>, vector<8x128xf32>
    %3 = math.sqrt %1 : vector<8x128xf32>
    %c0_3 = arith.constant 0 : index
    %c0_4 = arith.constant 0 : index
    %4 = vector.load %arg3[%c0_3, %c0_4] : memref<8x128xf32, #tpu.memory_space<vmem>>, vector<8x128xf32>
    %5 = arith.mulf %3, %4 : vector<8x128xf32>
    %6 = arith.addf %2, %5 : vector<8x128xf32>
    %c0_5 = arith.constant 0 : index
    %c0_6 = arith.constant 0 : index
    %7 = vector.load %arg4[%c0_5, %c0_6] : memref<8x128xf32, #tpu.memory_space<vmem>>, vector<8x128xf32>
    tpu.vector_store %arg4[%c0_5, %c0_6], %6 {strides = array<i32>} : memref<8x128xf32, #tpu.memory_space<vmem>>, vector<8x128xf32>,
    %c0_7 = arith.constant 0 : index
    %c0_8 = arith.constant 0 : index
    %8 = vector.load %arg5[%c0_7, %c0_8] : memref<8x128xf32, #tpu.memory_space<vmem>>, vector<8x128xf32>
    tpu.vector_store %arg5[%c0_7, %c0_8], %1 {strides = array<i32>} : memref<8x128xf32, #tpu.memory_space<vmem>>, vector<8x128xf32>,
    return
  }
  func.func @transform_0(%arg0: i32) -> (i32, i32) {
    %c0_i32 = arith.constant 0 : i32
    %c0_i32_0 = arith.constant 0 : i32
    return %arg0, %c0_i32 : i32, i32
  }
  func.func @transform_1(%arg0: i32) -> (i32, i32) {
    %c0_i32 = arith.constant 0 : i32
    %c0_i32_0 = arith.constant 0 : i32
    return %arg0, %c0_i32 : i32, i32
  }
  func.func @transform_2(%arg0: i32) -> (i32, i32) {
    %c0_i32 = arith.constant 0 : i32
    %c0_i32_0 = arith.constant 0 : i32
    return %arg0, %c0_i32 : i32, i32
  }
  func.func @transform_3(%arg0: i32) -> (i32, i32) {
    %c0_i32 = arith.constant 0 : i32
    %c0_i32_0 = arith.constant 0 : i32
    return %arg0, %c0_i32 : i32, i32
  }
  func.func @transform_4(%arg0: i32) -> (i32, i32) {
    %c0_i32 = arith.constant 0 : i32
    %c0_i32_0 = arith.constant 0 : i32
    return %arg0, %c0_i32 : i32, i32
  }
}

</mosaic_0001>

<llo_original>
// kernel: tpu_custom_call.1
$region0: #{tpu_custom_call.1}
  #allocation0 [shape = 'u32[]', space=smem, size = 0x4, offset = 0x4, fixed_abs, tag = 'smem constant byte address 0x4 - core index']
  #allocation1 [shape = 'u32[144,128]{1,0:T(1,128)}', space=vmem, size = 0x12000, scoped, tag = 'internal scratch']
  %s0 = inlined_call_operand.hbm [shape: f32[8,128], index: 0, kind: input, shape index: {}]
  %s1 = inlined_call_operand.hbm [shape: f32[8,128], index: 1, kind: input, shape index: {}]
  %s2 = inlined_call_operand.hbm [shape: f32[8,128], index: 2, kind: input, shape index: {}]
  %s3 = inlined_call_operand.hbm [shape: f32[8,128], index: 3, kind: output, shape index: {0}]
  %s4 = inlined_call_operand.hbm [shape: f32[8,128], index: 4, kind: output, shape index: {1}]
  %5 = xla_tuple %s3, %s4
  %s6 = sld [smem:[#allocation0]]
  $region42: #{tpu_custom_call.1} parent=0
    _
  %s8 = ssub.s32 1, %s6
  %s9 = scalar_select 0, %s8, %s6
  $region1: #{tpu_custom_call.1} parent=0
    #allocation2 [shape = 'u8[4096]{0}', space=vmem, size = 0x1000, scoped, tag = 'input window, operand 0, single buffered']
    #allocation3 [shape = 's32[1]{0}', space=sflag, size = 0x4, scoped, tag = 'scoped memory for tpu_custom_call.1']
    #allocation4 [shape = 's32[1]{0}', space=sflag, size = 0x4, scoped, tag = 'scoped memory for tpu_custom_call.1']
    #allocation5 [shape = 'u8[4096]{0}', space=vmem, size = 0x1000, scoped, tag = 'input window, operand 1, single buffered']
    #allocation6 [shape = 's32[1]{0}', space=sflag, size = 0x4, scoped, tag = 'scoped memory for tpu_custom_call.1']
    #allocation7 [shape = 'u8[4096]{0}', space=vmem, size = 0x1000, scoped, tag = 'input window, operand 2, single buffered']
    #allocation8 [shape = 'u8[4096]{0}', space=vmem, size = 0x1000, scoped, tag = 'output window, operand 0, single buffered']
    #allocation9 [shape = 'u8[4096]{0}', space=vmem, size = 0x1000, scoped, tag = 'output window, operand 1, single buffered']
    #allocation10 [shape = 's32[1]{0}', space=sflag, size = 0x4, scoped, tag = 'scoped memory for tpu_custom_call.1']
    %10 = vsyncpa [#allocation3], 0
    %11 = vsyncpa [#allocation6], 0
    %12 = vsyncpa [#allocation4], 0
    %13 = vsyncpa [#allocation10], 0
    // Predicated region
    $region2: #{tpu_custom_call.1} parent=1 // pred_check
      _
    $region3: #{tpu_custom_call.1} parent=1 // pred_check_branch
      %15 = sbr.rel (0) target = $region5
    $region4: #{tpu_custom_call.1} parent=1 // pred_region
      %s17 = ssub.s32 128, 128
      %18 = vsyncadd [#allocation3], %s17
      %s20 = sshll.u32 [#allocation2], 4
      %s21 = int_to_ptr.vmem [resolvable:$true] %s20
      %23 = dma.hbm_to_vmem [thread:$0]  %s0, 128, %s21, [#allocation3]
    $region5: #{tpu_custom_call.1} parent=1 // pred_fallthru
      _
    // Predicated region
    $region6: #{tpu_custom_call.1} parent=1 // pred_check
      _
    $region7: #{tpu_custom_call.1} parent=1 // pred_check_branch
      %25 = sbr.rel (0) target = $region9
    $region8: #{tpu_custom_call.1} parent=1 // pred_region
      %s27 = ssub.s32 128, 128
      %28 = vsyncadd [#allocation6], %s27
      %s30 = sshll.u32 [#allocation5], 4
      %s31 = int_to_ptr.vmem [resolvable:$true] %s30
      %33 = dma.hbm_to_vmem [thread:$0]  %s1, 128, %s31, [#allocation6]
    $region9: #{tpu_custom_call.1} parent=1 // pred_fallthru
      _
    // Predicated region
    $region10: #{tpu_custom_call.1} parent=1 // pred_check
      _
    $region11: #{tpu_custom_call.1} parent=1 // pred_check_branch
      %35 = sbr.rel (0) target = $region13
    $region12: #{tpu_custom_call.1} parent=1 // pred_region
      %s37 = ssub.s32 128, 128
      %38 = vsyncadd [#allocation6], %s37
      %s40 = sshll.u32 [#allocation7], 4
      %s41 = int_to_ptr.vmem [resolvable:$true] %s40
      %43 = dma.hbm_to_vmem [thread:$0]  %s2, 128, %s41, [#allocation6]
    $region13: #{tpu_custom_call.1} parent=1 // pred_fallthru
      _
    // Predicated region
    $region14: #{tpu_custom_call.1} parent=1 // pred_check
      _
    $region15: #{tpu_custom_call.1} parent=1 // pred_check_branch
      %45 = sbr.rel (0) target = $region17
    $region16: #{tpu_custom_call.1} parent=1 // pred_region
      %46 = dma.done [#allocation3], 128
    $region17: #{tpu_custom_call.1} parent=1 // pred_fallthru
      _
    // Predicated region
    $region18: #{tpu_custom_call.1} parent=1 // pred_check
      _
    $region19: #{tpu_custom_call.1} parent=1 // pred_check_branch
      %48 = sbr.rel (0) target = $region21
    $region20: #{tpu_custom_call.1} parent=1 // pred_region
      %49 = dma.done [#allocation6], 128
    $region21: #{tpu_custom_call.1} parent=1 // pred_fallthru
      _
    // Predicated region
    $region22: #{tpu_custom_call.1} parent=1 // pred_check
      _
    $region23: #{tpu_custom_call.1} parent=1 // pred_check_branch
      %51 = sbr.rel (0) target = $region25
    $region24: #{tpu_custom_call.1} parent=1 // pred_region
      %52 = dma.done [#allocation6], 128
    $region25: #{tpu_custom_call.1} parent=1 // pred_fallthru
      _
    %v53 = vld [vmem:[#allocation5] sm:$0xff]
    %v54 = vmul.f32 %v53, 1.442695
    %v55 = vpow.pop %v54
    %v56 = vld [vmem:[#allocation2] sm:$0xff]
    %v57 = vrsqrt.pop %v55
    %v58 = vmul.f32 %v55, %v57
    %vm59 = vcmp.eq.f32.partialorder %v55, inf
    %v60 = vsel %vm59, %v55, %v58
    %vm61 = vcmp.eq.f32.partialorder %v55, 0.0
    %v62 = vand.u32 %v55, 2147483648
    %v63 = vsel %vm61, %v62, %v60
    %v64 = vld [vmem:[#allocation7] sm:$0xff]
    %v65 = vmul.f32 %v63, %v64
    %v66 = vadd.f32 %v56, %v65
    %67 = vst [vmem:[#allocation8] sm:$0xff] %v66
    %68 = vst [vmem:[#allocation9] sm:$0xff] %v55
    // Predicated region
    $region26: #{tpu_custom_call.1} parent=1 // pred_check
      _
    $region27: #{tpu_custom_call.1} parent=1 // pred_check_branch
      %70 = sbr.rel (0) target = $region29
    $region28: #{tpu_custom_call.1} parent=1 // pred_region
      %s72 = ssub.s32 128, 128
      %73 = vsyncadd [#allocation4], %s72
      %s75 = sshll.u32 [#allocation8], 4
      %s76 = int_to_ptr.vmem [resolvable:$true] %s75
      %78 = dma.vmem_to_hbm [thread:$0]  %s76, 128, %s3, [#allocation4]
    $region29: #{tpu_custom_call.1} parent=1 // pred_fallthru
      _
    // Predicated region
    $region30: #{tpu_custom_call.1} parent=1 // pred_check
      _
    $region31: #{tpu_custom_call.1} parent=1 // pred_check_branch
      %80 = sbr.rel (0) target = $region33
    $region32: #{tpu_custom_call.1} parent=1 // pred_region
      %s82 = ssub.s32 128, 128
      %83 = vsyncadd [#allocation10], %s82
      %s85 = sshll.u32 [#allocation9], 4
      %s86 = int_to_ptr.vmem [resolvable:$true] %s85
      %88 = dma.vmem_to_hbm [thread:$0]  %s86, 128, %s4, [#allocation10]
    $region33: #{tpu_custom_call.1} parent=1 // pred_fallthru
      _
    // Predicated region
    $region34: #{tpu_custom_call.1} parent=1 // pred_check
      _
    $region35: #{tpu_custom_call.1} parent=1 // pred_check_branch
      %90 = sbr.rel (0) target = $region37
    $region36: #{tpu_custom_call.1} parent=1 // pred_region
      %91 = dma.done [#allocation4], 128
    $region37: #{tpu_custom_call.1} parent=1 // pred_fallthru
      _
    // Predicated region
    $region38: #{tpu_custom_call.1} parent=1 // pred_check
      _
    $region39: #{tpu_custom_call.1} parent=1 // pred_check_branch
      %93 = sbr.rel (0) target = $region41
    $region40: #{tpu_custom_call.1} parent=1 // pred_region
      %94 = dma.done [#allocation10], 128
    $region41: #{tpu_custom_call.1} parent=1 // pred_fallthru
      _
    %95 = vsyncpa [#allocation3], 1
    %96 = vsyncpa [#allocation6], 1
    %97 = vsyncpa [#allocation4], 1
    %98 = vsyncpa [#allocation10], 1

</llo_original>
